<compile_context>
chip_gen: v5e
topology: v5e:2x2
jax: 0.10.0
libtpu: 0.0.40
codegen_flags: <defaults>
</compile_context>

<pallas_src>
import jax
import jax.numpy as jnp
from jax.experimental import pallas as pl
from jax.experimental.pallas import tpu as pltpu


# ----------------------------------------------------------------------------
# Helpers
# ----------------------------------------------------------------------------

def _lane_pad(w: int) -> int:
    """Lane-padded width: each VMEM row occupies full 128-lane tiles."""
    return max(128, ((w + 127) // 128) * 128)


def _sublane_quantum(itemsize: int) -> int:
    """Sublane packing quantum for the second-to-last dim: 8/16/32 rows."""
    return max(8, 32 // max(int(itemsize), 1))


def _choose_node_tile(n: int, bytes_per_row_padded: int, quantum: int) -> int:
    """Rows per grid step, from a lane-padded, double-buffer-aware budget."""
    # ~4 MiB of blocks per step -> ~8 MiB double-buffered: fits v5e's 16 MiB
    # scoped-VMEM default and v7x's 32 MiB scoped limit with headroom.
    budget = 4 * 1024 * 1024
    tn = budget // max(bytes_per_row_padded, 1)
    tn = max(quantum, (tn // quantum) * quantum)
    if n <= tn:
        # Whole problem fits in one tile.  If it is large enough to be
        # bandwidth-bound, still split into >=2 grid steps so v7x's two
        # TensorCores both get work and DMA overlaps compute; tiny problems
        # stay as one full-extent block (waives the (8,128) row rule).
        total_bytes = n * bytes_per_row_padded
        if total_bytes > 2 * 1024 * 1024 and n >= 2 * quantum:
            half = -(-n // 2)  # cdiv(n, 2)
            return ((half + quantum - 1) // quantum) * quantum
        return n
    return tn


# ----------------------------------------------------------------------------
# Fused kernel over all shared degrees
# ----------------------------------------------------------------------------

def _make_fused_kernel(widths):
    """widths: list of (narrow_width, wide_width) per shared degree.

    Kernel args (in order):
        wide_0, narrow_0, wide_1, narrow_1, ..., out_0, out_1, ...
    Each wide/out block is (tn, wide_width); each narrow block (tn, narrow_width).
    """
    n_deg = len(widths)

    def kernel(*refs):
        in_refs = refs[: 2 * n_deg]
        out_refs = refs[2 * n_deg:]
        for d, (nm, wm) in enumerate(widths):
            wide = in_refs[2 * d][...]
            narrow = in_refs[2 * d + 1][...]
            o_ref = out_refs[d]
            if wm > nm:
                # Zero-extend the narrow tile in-register, then one full-width
                # store (no overlapping masked partial stores).
                pad = jnp.zeros((narrow.shape[0], wm - nm), dtype=narrow.dtype)
                narrow = jnp.concatenate([narrow, pad], axis=-1)
            o_ref[...] = wide + narrow

    return kernel


def _fused_padded_add(pairs):
    """pairs: list of (wide2, narrow2) 2-D arrays sharing leading dim N.

    Returns a list of (N, wide_width) arrays: wide + zero-padded(narrow).
    """
    n = pairs[0][0].shape[0]
    widths = [(nar.shape[1], wid.shape[1]) for wid, nar in pairs]
    dtypes = [wid.dtype for wid, _ in pairs]

    # Tile sizing: lane-padded widths, dtype-aware sublane alignment.
    min_itemsize = min(jnp.dtype(dt).itemsize for dt in dtypes)
    quantum = _sublane_quantum(min_itemsize)
    bytes_per_row = 0
    for (nm, wm), dt in zip(widths, dtypes):
        isz = jnp.dtype(dt).itemsize
        bytes_per_row += (2 * _lane_pad(wm) + _lane_pad(nm)) * isz
    tn = _choose_node_tile(n, bytes_per_row, quantum)
    grid = (pl.cdiv(n, tn),)

    in_specs, operands, out_specs, out_shapes = [], [], [], []
    for (wid, nar), (nm, wm), dt in zip(pairs, widths, dtypes):
        in_specs.append(pl.BlockSpec((tn, wm), lambda i: (i, 0)))
        in_specs.append(pl.BlockSpec((tn, nm), lambda i: (i, 0)))
        operands.extend([wid, nar])
        out_specs.append(pl.BlockSpec((tn, wm), lambda i: (i, 0)))
        out_shapes.append(jax.ShapeDtypeStruct((n, wm), dt))

    outs = pl.pallas_call(
        _make_fused_kernel(widths),
        out_shape=tuple(out_shapes),
        grid_spec=pltpu.PrefetchScalarGridSpec(
            num_scalar_prefetch=0,
            grid=grid,
            in_specs=in_specs,
            out_specs=out_specs,
        ),
        compiler_params=pltpu.CompilerParams(
            dimension_semantics=("parallel",),
        ),
    )(*operands)
    return list(outs)


# ----------------------------------------------------------------------------
# GSum.forward over fiber dicts keyed by str(degree)
# ----------------------------------------------------------------------------

def gsum_forward(x: dict, y: dict) -> dict:
    out_degrees = sorted(set(int(k) for k in x) | set(int(k) for k in y))
    out = {}
    shared = []
    for kd in out_degrees:
        k = str(kd)
        if k in x and k in y:
            shared.append(k)
        elif k in x:
            out[k] = x[k]
        else:
            out[k] = y[k]

    if shared:
        pairs, meta = [], []
        for k in shared:
            xa, ya = x[k], y[k]
            n, cx, m = xa.shape
            ny_, cy, my_ = ya.shape
            assert n == ny_ and m == my_, (xa.shape, ya.shape)
            dt = jnp.result_type(xa.dtype, ya.dtype)
            xa = xa.astype(dt)
            ya = ya.astype(dt)
            # Canonical order: "wide" operand has >= channels.
            if cx >= cy:
                wide, narrow, c_wide, c_narrow = xa, ya, cx, cy
            else:
                wide, narrow, c_wide, c_narrow = ya, xa, cy, cx
            # Free reshapes: M is innermost, channel ranges stay contiguous.
            pairs.append((wide.reshape(n, c_wide * m),
                          narrow.reshape(n, c_narrow * m)))
            meta.append((k, n, c_wide, m))
        results = _fused_padded_add(pairs)
        for (k, n, c_wide, m), r in zip(meta, results):
            out[k] = r.reshape(n, c_wide, m)
    return out


def _reference_gsum(x: dict, y: dict) -> dict:
    out_degrees = sorted(set(int(k) for k in x) | set(int(k) for k in y))
    out = {}
    for kd in out_degrees:
        k = str(kd)
        if k in x and k in y:
            xa, ya = x[k], y[k]
            cmax = max(xa.shape[1], ya.shape[1])
            xa = jnp.pad(xa, ((0, 0), (0, cmax - xa.shape[1]), (0, 0)))
            ya = jnp.pad(ya, ((0, 0), (0, cmax - ya.shape[1]), (0, 0)))
            out[k] = xa + ya
        elif k in x:
            out[k] = x[k]
        else:
            out[k] = y[k]
    return out


if __name__ == "__main__":
    # Synthetic fibers:
    #   f_x   = {0: 16, 1: 8}          (degree -> channels)
    #   f_y   = {0: 8, 1: 16, 2: 4}
    #   f_out = combine_max = {0: 16, 1: 16, 2: 4}
    # Degree-k features have rep dim 2k+1.  N = number of graph nodes.
    N = 512
    key = jax.random.PRNGKey(0)
    k0, k1, k2, k3, k4 = jax.random.split(key, 5)

    x = {
        "0": jax.random.normal(k0, (N, 16, 1), dtype=jnp.float32),
        "1": jax.random.normal(k1, (N, 8, 3), dtype=jnp.float32),
    }
    y = {
        "0": jax.random.normal(k2, (N, 8, 1), dtype=jnp.float32),
        "1": jax.random.normal(k3, (N, 16, 3), dtype=jnp.float32),
        "2": jax.random.normal(k4, (N, 4, 5), dtype=jnp.float32),
    }

    out = gsum_forward(x, y)
    out = jax.tree_util.tree_map(jax.block_until_ready, out)

    ref = _reference_gsum(x, y)
    for k in ref:
        assert out[k].shape == ref[k].shape, (k, out[k].shape, ref[k].shape)
        assert jnp.allclose(out[k], ref[k], atol=1e-6), f"mismatch at degree {k}"

    print("KERNEL_OK")
</pallas_src>

<mosaic_0001>
module attributes {stable_mosaic.version = 11 : i64} {
  func.func @kernel(%arg0: i32, %arg1: memref<512x16xf32, #tpu.memory_space<vmem>>, %arg2: memref<512x8xf32, #tpu.memory_space<vmem>>, %arg3: memref<512x48xf32, #tpu.memory_space<vmem>>, %arg4: memref<512x24xf32, #tpu.memory_space<vmem>>, %arg5: memref<512x16xf32, #tpu.memory_space<vmem>>, %arg6: memref<512x48xf32, #tpu.memory_space<vmem>>) attributes {dimension_semantics = [#tpu.dimension_semantics<parallel>], iteration_bounds = array<i64: 1>, scalar_prefetch = 0 : i64, scratch_operands = 0 : i64, tpu.core_type = #tpu.core_type<tc>, window_params = [{transform_indices = @transform_0, window_bounds = array<i64: 512, 16>}, {transform_indices = @transform_1, window_bounds = array<i64: 512, 8>}, {transform_indices = @transform_2, window_bounds = array<i64: 512, 48>}, {transform_indices = @transform_3, window_bounds = array<i64: 512, 24>}, {transform_indices = @transform_4, window_bounds = array<i64: 512, 16>}, {transform_indices = @transform_5, window_bounds = array<i64: 512, 48>}]} {
    %c0 = arith.constant 0 : index
    %c0_0 = arith.constant 0 : index
    %0 = vector.load %arg1[%c0, %c0_0] : memref<512x16xf32, #tpu.memory_space<vmem>>, vector<512x16xf32>
    %c0_1 = arith.constant 0 : index
    %c0_2 = arith.constant 0 : index
    %1 = vector.load %arg2[%c0_1, %c0_2] : memref<512x8xf32, #tpu.memory_space<vmem>>, vector<512x8xf32>
    %cst = arith.constant 0.000000e+00 : f32
    %2 = vector.broadcast %cst : f32 to vector<512x8xf32>
    %3 = tpu.concatenate %1, %2 in 1 : vector<512x8xf32>, vector<512x8xf32> -> vector<512x16xf32>
    %4 = arith.addf %0, %3 : vector<512x16xf32>
    %c0_3 = arith.constant 0 : index
    %c0_4 = arith.constant 0 : index
    %5 = vector.load %arg5[%c0_3, %c0_4] : memref<512x16xf32, #tpu.memory_space<vmem>>, vector<512x16xf32>
    tpu.vector_store %arg5[%c0_3, %c0_4], %4 {strides = array<i32>} : memref<512x16xf32, #tpu.memory_space<vmem>>, vector<512x16xf32>,
    %c0_5 = arith.constant 0 : index
    %c0_6 = arith.constant 0 : index
    %6 = vector.load %arg3[%c0_5, %c0_6] : memref<512x48xf32, #tpu.memory_space<vmem>>, vector<512x48xf32>
    %c0_7 = arith.constant 0 : index
    %c0_8 = arith.constant 0 : index
    %7 = vector.load %arg4[%c0_7, %c0_8] : memref<512x24xf32, #tpu.memory_space<vmem>>, vector<512x24xf32>
    %cst_9 = arith.constant 0.000000e+00 : f32
    %8 = vector.broadcast %cst_9 : f32 to vector<512x24xf32>
    %9 = tpu.concatenate %7, %8 in 1 : vector<512x24xf32>, vector<512x24xf32> -> vector<512x48xf32>
    %10 = arith.addf %6, %9 : vector<512x48xf32>
    %c0_10 = arith.constant 0 : index
    %c0_11 = arith.constant 0 : index
    %11 = vector.load %arg6[%c0_10, %c0_11] : memref<512x48xf32, #tpu.memory_space<vmem>>, vector<512x48xf32>
    tpu.vector_store %arg6[%c0_10, %c0_11], %10 {strides = array<i32>} : memref<512x48xf32, #tpu.memory_space<vmem>>, vector<512x48xf32>,
    return
  }
  func.func @transform_0(%arg0: i32) -> (i32, i32) {
    %c0_i32 = arith.constant 0 : i32
    %c0_i32_0 = arith.constant 0 : i32
    return %arg0, %c0_i32 : i32, i32
  }
  func.func @transform_1(%arg0: i32) -> (i32, i32) {
    %c0_i32 = arith.constant 0 : i32
    %c0_i32_0 = arith.constant 0 : i32
    return %arg0, %c0_i32 : i32, i32
  }
  func.func @transform_2(%arg0: i32) -> (i32, i32) {
    %c0_i32 = arith.constant 0 : i32
    %c0_i32_0 = arith.constant 0 : i32
    return %arg0, %c0_i32 : i32, i32
  }
  func.func @transform_3(%arg0: i32) -> (i32, i32) {
    %c0_i32 = arith.constant 0 : i32
    %c0_i32_0 = arith.constant 0 : i32
    return %arg0, %c0_i32 : i32, i32
  }
  func.func @transform_4(%arg0: i32) -> (i32, i32) {
    %c0_i32 = arith.constant 0 : i32
    %c0_i32_0 = arith.constant 0 : i32
    return %arg0, %c0_i32 : i32, i32
  }
  func.func @transform_5(%arg0: i32) -> (i32, i32) {
    %c0_i32 = arith.constant 0 : i32
    %c0_i32_0 = arith.constant 0 : i32
    return %arg0, %c0_i32 : i32, i32
  }
}

</mosaic_0001>

<llo_original>
// kernel: tpu_custom_call.1
$region0: #{tpu_custom_call.1}
  #allocation0 [shape = 'u32[]', space=smem, size = 0x4, offset = 0x4, fixed_abs, tag = 'smem constant byte address 0x4 - core index']
  #allocation1 [shape = 'u32[72,128]{1,0:T(1,128)}', space=vmem, size = 0x9000, scoped, tag = 'internal scratch']
  %s0 = inlined_call_operand.vmem [shape: f32[512,16], index: 0, kind: input, shape index: {}]
  %s1 = inlined_call_operand.vmem [shape: f32[512,8], index: 1, kind: input, shape index: {}]
  %s2 = inlined_call_operand.vmem [shape: f32[512,48], index: 2, kind: input, shape index: {}]
  %s3 = inlined_call_operand.vmem [shape: f32[512,24], index: 3, kind: input, shape index: {}]
  %s4 = inlined_call_operand.vmem [shape: f32[512,16], index: 4, kind: output, shape index: {0}]
  %s5 = inlined_call_operand.vmem [shape: f32[512,48], index: 5, kind: output, shape index: {1}]
  %6 = xla_tuple %s4, %s5
  %s7 = sld [smem:[#allocation0]]
  $region34: #{tpu_custom_call.1} parent=0
    _
  %s9 = ssub.s32 1, %s7
  %s10 = scalar_select 0, %s9, %s7
  // Predicated region
  $region2: #{tpu_custom_call.1} parent=0 // pred_check
    _
  $region3: #{tpu_custom_call.1} parent=0 // pred_check_branch
    %12 = sbr.rel (0) target = $region5
  $region4: #{tpu_custom_call.1} parent=0 // pred_region
    _
  $region5: #{tpu_custom_call.1} parent=0 // pred_fallthru
    _
  // Predicated region
  $region6: #{tpu_custom_call.1} parent=0 // pred_check
    _
  $region7: #{tpu_custom_call.1} parent=0 // pred_check_branch
    %14 = sbr.rel (0) target = $region9
  $region8: #{tpu_custom_call.1} parent=0 // pred_region
    _
  $region9: #{tpu_custom_call.1} parent=0 // pred_fallthru
    _
  // Predicated region
  $region10: #{tpu_custom_call.1} parent=0 // pred_check
    _
  $region11: #{tpu_custom_call.1} parent=0 // pred_check_branch
    %16 = sbr.rel (0) target = $region13
  $region12: #{tpu_custom_call.1} parent=0 // pred_region
    _
  $region13: #{tpu_custom_call.1} parent=0 // pred_fallthru
    _
  // Predicated region
  $region14: #{tpu_custom_call.1} parent=0 // pred_check
    _
  $region15: #{tpu_custom_call.1} parent=0 // pred_check_branch
    %18 = sbr.rel (0) target = $region17
  $region16: #{tpu_custom_call.1} parent=0 // pred_region
    _
  $region17: #{tpu_custom_call.1} parent=0 // pred_fallthru
    _
  %v19 = vld [vmem:[%s0] sm:$0xff]
  %v20 = vld [vmem:[%s0 + $0x8] sm:$0xff]
  %v21 = vld [vmem:[%s0 + $0x10] sm:$0xff]
  %v22 = vld [vmem:[%s0 + $0x18] sm:$0xff]
  %v23 = vld [vmem:[%s0 + $0x20] sm:$0xff]
  %v24 = vld [vmem:[%s0 + $0x28] sm:$0xff]
  %v25 = vld [vmem:[%s0 + $0x30] sm:$0xff]
  %v26 = vld [vmem:[%s0 + $0x38] sm:$0xff]
  %v27 = vld [vmem:[%s0 + $0x40] sm:$0xff]
  %v28 = vld [vmem:[%s0 + $0x48] sm:$0xff]
  %v29 = vld [vmem:[%s0 + $0x50] sm:$0xff]
  %v30 = vld [vmem:[%s0 + $0x58] sm:$0xff]
  %v31 = vld [vmem:[%s0 + $0x60] sm:$0xff]
  %v32 = vld [vmem:[%s0 + $0x68] sm:$0xff]
  %v33 = vld [vmem:[%s0 + $0x70] sm:$0xff]
  %v34 = vld [vmem:[%s0 + $0x78] sm:$0xff]
  %v35 = vld [vmem:[%s0 + $0x80] sm:$0xff]
  %v36 = vld [vmem:[%s0 + $0x88] sm:$0xff]
  %v37 = vld [vmem:[%s0 + $0x90] sm:$0xff]
  %v38 = vld [vmem:[%s0 + $0x98] sm:$0xff]
  %v39 = vld [vmem:[%s0 + $0xa0] sm:$0xff]
  %v40 = vld [vmem:[%s0 + $0xa8] sm:$0xff]
  %v41 = vld [vmem:[%s0 + $0xb0] sm:$0xff]
  %v42 = vld [vmem:[%s0 + $0xb8] sm:$0xff]
  %v43 = vld [vmem:[%s0 + $0xc0] sm:$0xff]
  %v44 = vld [vmem:[%s0 + $0xc8] sm:$0xff]
  %v45 = vld [vmem:[%s0 + $0xd0] sm:$0xff]
  %v46 = vld [vmem:[%s0 + $0xd8] sm:$0xff]
  %v47 = vld [vmem:[%s0 + $0xe0] sm:$0xff]
  %v48 = vld [vmem:[%s0 + $0xe8] sm:$0xff]
  %v49 = vld [vmem:[%s0 + $0xf0] sm:$0xff]
  %v50 = vld [vmem:[%s0 + $0xf8] sm:$0xff]
  %v51 = vld [vmem:[%s0 + $0x100] sm:$0xff]
  %v52 = vld [vmem:[%s0 + $0x108] sm:$0xff]
  %v53 = vld [vmem:[%s0 + $0x110] sm:$0xff]
  %v54 = vld [vmem:[%s0 + $0x118] sm:$0xff]
  %v55 = vld [vmem:[%s0 + $0x120] sm:$0xff]
  %v56 = vld [vmem:[%s0 + $0x128] sm:$0xff]
  %v57 = vld [vmem:[%s0 + $0x130] sm:$0xff]
  %v58 = vld [vmem:[%s0 + $0x138] sm:$0xff]
  %v59 = vld [vmem:[%s0 + $0x140] sm:$0xff]
  %v60 = vld [vmem:[%s0 + $0x148] sm:$0xff]
  %v61 = vld [vmem:[%s0 + $0x150] sm:$0xff]
  %v62 = vld [vmem:[%s0 + $0x158] sm:$0xff]
  %v63 = vld [vmem:[%s0 + $0x160] sm:$0xff]
  %v64 = vld [vmem:[%s0 + $0x168] sm:$0xff]
  %v65 = vld [vmem:[%s0 + $0x170] sm:$0xff]
  %v66 = vld [vmem:[%s0 + $0x178] sm:$0xff]
  %v67 = vld [vmem:[%s0 + $0x180] sm:$0xff]
  %v68 = vld [vmem:[%s0 + $0x188] sm:$0xff]
  %v69 = vld [vmem:[%s0 + $0x190] sm:$0xff]
  %v70 = vld [vmem:[%s0 + $0x198] sm:$0xff]
  %v71 = vld [vmem:[%s0 + $0x1a0] sm:$0xff]
  %v72 = vld [vmem:[%s0 + $0x1a8] sm:$0xff]
  %v73 = vld [vmem:[%s0 + $0x1b0] sm:$0xff]
  %v74 = vld [vmem:[%s0 + $0x1b8] sm:$0xff]
  %v75 = vld [vmem:[%s0 + $0x1c0] sm:$0xff]
  %v76 = vld [vmem:[%s0 + $0x1c8] sm:$0xff]
  %v77 = vld [vmem:[%s0 + $0x1d0] sm:$0xff]
  %v78 = vld [vmem:[%s0 + $0x1d8] sm:$0xff]
  %v79 = vld [vmem:[%s0 + $0x1e0] sm:$0xff]
  %v80 = vld [vmem:[%s0 + $0x1e8] sm:$0xff]
  %v81 = vld [vmem:[%s0 + $0x1f0] sm:$0xff]
  %v82 = vld [vmem:[%s0 + $0x1f8] sm:$0xff]
  %v83 = vld [vmem:[%s1] sm:$0xff]
  %v84 = vld [vmem:[%s1 + $0x8] sm:$0xff]
  %v85 = vld [vmem:[%s1 + $0x10] sm:$0xff]
  %v86 = vld [vmem:[%s1 + $0x18] sm:$0xff]
  %v87 = vld [vmem:[%s1 + $0x20] sm:$0xff]
  %v88 = vld [vmem:[%s1 + $0x28] sm:$0xff]
  %v89 = vld [vmem:[%s1 + $0x30] sm:$0xff]
  %v90 = vld [vmem:[%s1 + $0x38] sm:$0xff]
  %v91 = vld [vmem:[%s1 + $0x40] sm:$0xff]
  %v92 = vld [vmem:[%s1 + $0x48] sm:$0xff]
  %v93 = vld [vmem:[%s1 + $0x50] sm:$0xff]
  %v94 = vld [vmem:[%s1 + $0x58] sm:$0xff]
  %v95 = vld [vmem:[%s1 + $0x60] sm:$0xff]
  %v96 = vld [vmem:[%s1 + $0x68] sm:$0xff]
  %v97 = vld [vmem:[%s1 + $0x70] sm:$0xff]
  %v98 = vld [vmem:[%s1 + $0x78] sm:$0xff]
  %v99 = vld [vmem:[%s1 + $0x80] sm:$0xff]
  %v100 = vld [vmem:[%s1 + $0x88] sm:$0xff]
  %v101 = vld [vmem:[%s1 + $0x90] sm:$0xff]
  %v102 = vld [vmem:[%s1 + $0x98] sm:$0xff]
  %v103 = vld [vmem:[%s1 + $0xa0] sm:$0xff]
  %v104 = vld [vmem:[%s1 + $0xa8] sm:$0xff]
  %v105 = vld [vmem:[%s1 + $0xb0] sm:$0xff]
  %v106 = vld [vmem:[%s1 + $0xb8] sm:$0xff]
  %v107 = vld [vmem:[%s1 + $0xc0] sm:$0xff]
  %v108 = vld [vmem:[%s1 + $0xc8] sm:$0xff]
  %v109 = vld [vmem:[%s1 + $0xd0] sm:$0xff]
  %v110 = vld [vmem:[%s1 + $0xd8] sm:$0xff]
  %v111 = vld [vmem:[%s1 + $0xe0] sm:$0xff]
  %v112 = vld [vmem:[%s1 + $0xe8] sm:$0xff]
  %v113 = vld [vmem:[%s1 + $0xf0] sm:$0xff]
  %v114 = vld [vmem:[%s1 + $0xf8] sm:$0xff]
  %v115 = vld [vmem:[%s1 + $0x100] sm:$0xff]
  %v116 = vld [vmem:[%s1 + $0x108] sm:$0xff]
  %v117 = vld [vmem:[%s1 + $0x110] sm:$0xff]
  %v118 = vld [vmem:[%s1 + $0x118] sm:$0xff]
  %v119 = vld [vmem:[%s1 + $0x120] sm:$0xff]
  %v120 = vld [vmem:[%s1 + $0x128] sm:$0xff]
  %v121 = vld [vmem:[%s1 + $0x130] sm:$0xff]
  %v122 = vld [vmem:[%s1 + $0x138] sm:$0xff]
  %v123 = vld [vmem:[%s1 + $0x140] sm:$0xff]
  %v124 = vld [vmem:[%s1 + $0x148] sm:$0xff]
  %v125 = vld [vmem:[%s1 + $0x150] sm:$0xff]
  %v126 = vld [vmem:[%s1 + $0x158] sm:$0xff]
  %v127 = vld [vmem:[%s1 + $0x160] sm:$0xff]
  %v128 = vld [vmem:[%s1 + $0x168] sm:$0xff]
  %v129 = vld [vmem:[%s1 + $0x170] sm:$0xff]
  %v130 = vld [vmem:[%s1 + $0x178] sm:$0xff]
  %v131 = vld [vmem:[%s1 + $0x180] sm:$0xff]
  %v132 = vld [vmem:[%s1 + $0x188] sm:$0xff]
  %v133 = vld [vmem:[%s1 + $0x190] sm:$0xff]
  %v134 = vld [vmem:[%s1 + $0x198] sm:$0xff]
  %v135 = vld [vmem:[%s1 + $0x1a0] sm:$0xff]
  %v136 = vld [vmem:[%s1 + $0x1a8] sm:$0xff]
  %v137 = vld [vmem:[%s1 + $0x1b0] sm:$0xff]
  %v138 = vld [vmem:[%s1 + $0x1b8] sm:$0xff]
  %v139 = vld [vmem:[%s1 + $0x1c0] sm:$0xff]
  %v140 = vld [vmem:[%s1 + $0x1c8] sm:$0xff]
  %v141 = vld [vmem:[%s1 + $0x1d0] sm:$0xff]
  %v142 = vld [vmem:[%s1 + $0x1d8] sm:$0xff]
  %v143 = vld [vmem:[%s1 + $0x1e0] sm:$0xff]
  %v144 = vld [vmem:[%s1 + $0x1e8] sm:$0xff]
  %v145 = vld [vmem:[%s1 + $0x1f0] sm:$0xff]
  %v146 = vld [vmem:[%s1 + $0x1f8] sm:$0xff]
  %vm147 = vcmask 64512
  %v148 = vsel %vm147, %v83, 0.0
  %v149 = vsel %vm147, %v84, 0.0
  %v150 = vsel %vm147, %v85, 0.0
  %v151 = vsel %vm147, %v86, 0.0
  %v152 = vsel %vm147, %v87, 0.0
  %v153 = vsel %vm147, %v88, 0.0
  %v154 = vsel %vm147, %v89, 0.0
  %v155 = vsel %vm147, %v90, 0.0
  %v156 = vsel %vm147, %v91, 0.0
  %v157 = vsel %vm147, %v92, 0.0
  %v158 = vsel %vm147, %v93, 0.0
  %v159 = vsel %vm147, %v94, 0.0
  %v160 = vsel %vm147, %v95, 0.0
  %v161 = vsel %vm147, %v96, 0.0
  %v162 = vsel %vm147, %v97, 0.0
  %v163 = vsel %vm147, %v98, 0.0
  %v164 = vsel %vm147, %v99, 0.0
  %v165 = vsel %vm147, %v100, 0.0
  %v166 = vsel %vm147, %v101, 0.0
  %v167 = vsel %vm147, %v102, 0.0
  %v168 = vsel %vm147, %v103, 0.0
  %v169 = vsel %vm147, %v104, 0.0
  %v170 = vsel %vm147, %v105, 0.0
  %v171 = vsel %vm147, %v106, 0.0
  %v172 = vsel %vm147, %v107, 0.0
  %v173 = vsel %vm147, %v108, 0.0
  %v174 = vsel %vm147, %v109, 0.0
  %v175 = vsel %vm147, %v110, 0.0
  %v176 = vsel %vm147, %v111, 0.0
  %v177 = vsel %vm147, %v112, 0.0
  %v178 = vsel %vm147, %v113, 0.0
  %v179 = vsel %vm147, %v114, 0.0
  %v180 = vsel %vm147, %v115, 0.0
  %v181 = vsel %vm147, %v116, 0.0
  %v182 = vsel %vm147, %v117, 0.0
  %v183 = vsel %vm147, %v118, 0.0
  %v184 = vsel %vm147, %v119, 0.0
  %v185 = vsel %vm147, %v120, 0.0
  %v186 = vsel %vm147, %v121, 0.0
  %v187 = vsel %vm147, %v122, 0.0
  %v188 = vsel %vm147, %v123, 0.0
  %v189 = vsel %vm147, %v124, 0.0
  %v190 = vsel %vm147, %v125, 0.0
  %v191 = vsel %vm147, %v126, 0.0
  %v192 = vsel %vm147, %v127, 0.0
  %v193 = vsel %vm147, %v128, 0.0
  %v194 = vsel %vm147, %v129, 0.0
  %v195 = vsel %vm147, %v130, 0.0
  %v196 = vsel %vm147, %v131, 0.0
  %v197 = vsel %vm147, %v132, 0.0
  %v198 = vsel %vm147, %v133, 0.0
  %v199 = vsel %vm147, %v134, 0.0
  %v200 = vsel %vm147, %v135, 0.0
  %v201 = vsel %vm147, %v136, 0.0
  %v202 = vsel %vm147, %v137, 0.0
  %v203 = vsel %vm147, %v138, 0.0
  %v204 = vsel %vm147, %v139, 0.0
  %v205 = vsel %vm147, %v140, 0.0
  %v206 = vsel %vm147, %v141, 0.0
  %v207 = vsel %vm147, %v142, 0.0
  %v208 = vsel %vm147, %v143, 0.0
  %v209 = vsel %vm147, %v144, 0.0
  %v210 = vsel %vm147, %v145, 0.0
  %v211 = vsel %vm147, %v146, 0.0
  %v212 = vadd.f32 %v19, %v148
  %v213 = vadd.f32 %v20, %v149
  %v214 = vadd.f32 %v21, %v150
  %v215 = vadd.f32 %v22, %v151
  %v216 = vadd.f32 %v23, %v152
  %v217 = vadd.f32 %v24, %v153
  %v218 = vadd.f32 %v25, %v154
  %v219 = vadd.f32 %v26, %v155
  %v220 = vadd.f32 %v27, %v156
  %v221 = vadd.f32 %v28, %v157
  %v222 = vadd.f32 %v29, %v158
  %v223 = vadd.f32 %v30, %v159
  %v224 = vadd.f32 %v31, %v160
  %v225 = vadd.f32 %v32, %v161
  %v226 = vadd.f32 %v33, %v162
  %v227 = vadd.f32 %v34, %v163
  %v228 = vadd.f32 %v35, %v164
  %v229 = vadd.f32 %v36, %v165
  %v230 = vadd.f32 %v37, %v166
  %v231 = vadd.f32 %v38, %v167
  %v232 = vadd.f32 %v39, %v168
  %v233 = vadd.f32 %v40, %v169
  %v234 = vadd.f32 %v41, %v170
  %v235 = vadd.f32 %v42, %v171
  %v236 = vadd.f32 %v43, %v172
  %v237 = vadd.f32 %v44, %v173
  %v238 = vadd.f32 %v45, %v174
  %v239 = vadd.f32 %v46, %v175
  %v240 = vadd.f32 %v47, %v176
  %v241 = vadd.f32 %v48, %v177
  %v242 = vadd.f32 %v49, %v178
  %v243 = vadd.f32 %v50, %v179
  %v244 = vadd.f32 %v51, %v180
  %v245 = vadd.f32 %v52, %v181
  %v246 = vadd.f32 %v53, %v182
  %v247 = vadd.f32 %v54, %v183
  %v248 = vadd.f32 %v55, %v184
  %v249 = vadd.f32 %v56, %v185
  %v250 = vadd.f32 %v57, %v186
  %v251 = vadd.f32 %v58, %v187
  %v252 = vadd.f32 %v59, %v188
  %v253 = vadd.f32 %v60, %v189
  %v254 = vadd.f32 %v61, %v190
  %v255 = vadd.f32 %v62, %v191
  %v256 = vadd.f32 %v63, %v192
  %v257 = vadd.f32 %v64, %v193
  %v258 = vadd.f32 %v65, %v194
  %v259 = vadd.f32 %v66, %v195
  %v260 = vadd.f32 %v67, %v196
  %v261 = vadd.f32 %v68, %v197
  %v262 = vadd.f32 %v69, %v198
  %v263 = vadd.f32 %v70, %v199
  %v264 = vadd.f32 %v71, %v200
  %v265 = vadd.f32 %v72, %v201
  %v266 = vadd.f32 %v73, %v202
  %v267 = vadd.f32 %v74, %v203
  %v268 = vadd.f32 %v75, %v204
  %v269 = vadd.f32 %v76, %v205
  %v270 = vadd.f32 %v77, %v206
  %v271 = vadd.f32 %v78, %v207
  %v272 = vadd.f32 %v79, %v208
  %v273 = vadd.f32 %v80, %v209
  %v274 = vadd.f32 %v81, %v210
  %v275 = vadd.f32 %v82, %v211
  %vm276 = vcmask 130048
  %277 = vst.msk [vmem:[%s4] sm:$0xff] %vm276, %v212
  %278 = vst.msk [vmem:[%s4 + $0x8] sm:$0xff] %vm276, %v213
  %279 = vst.msk [vmem:[%s4 + $0x10] sm:$0xff] %vm276, %v214
  %280 = vst.msk [vmem:[%s4 + $0x18] sm:$0xff] %vm276, %v215
  %281 = vst.msk [vmem:[%s4 + $0x20] sm:$0xff] %vm276, %v216
  %282 = vst.msk [vmem:[%s4 + $0x28] sm:$0xff] %vm276, %v217
  %283 = vst.msk [vmem:[%s4 + $0x30] sm:$0xff] %vm276, %v218
  %284 = vst.msk [vmem:[%s4 + $0x38] sm:$0xff] %vm276, %v219
  %285 = vst.msk [vmem:[%s4 + $0x40] sm:$0xff] %vm276, %v220
  %286 = vst.msk [vmem:[%s4 + $0x48] sm:$0xff] %vm276, %v221
  %287 = vst.msk [vmem:[%s4 + $0x50] sm:$0xff] %vm276, %v222
  %288 = vst.msk [vmem:[%s4 + $0x58] sm:$0xff] %vm276, %v223
  %289 = vst.msk [vmem:[%s4 + $0x60] sm:$0xff] %vm276, %v224
  %290 = vst.msk [vmem:[%s4 + $0x68] sm:$0xff] %vm276, %v225
  %291 = vst.msk [vmem:[%s4 + $0x70] sm:$0xff] %vm276, %v226
  %292 = vst.msk [vmem:[%s4 + $0x78] sm:$0xff] %vm276, %v227
  %293 = vst.msk [vmem:[%s4 + $0x80] sm:$0xff] %vm276, %v228
  %294 = vst.msk [vmem:[%s4 + $0x88] sm:$0xff] %vm276, %v229
  %295 = vst.msk [vmem:[%s4 + $0x90] sm:$0xff] %vm276, %v230
  %296 = vst.msk [vmem:[%s4 + $0x98] sm:$0xff] %vm276, %v231
  %297 = vst.msk [vmem:[%s4 + $0xa0] sm:$0xff] %vm276, %v232
  %298 = vst.msk [vmem:[%s4 + $0xa8] sm:$0xff] %vm276, %v233
  %299 = vst.msk [vmem:[%s4 + $0xb0] sm:$0xff] %vm276, %v234
  %300 = vst.msk [vmem:[%s4 + $0xb8] sm:$0xff] %vm276, %v235
  %301 = vst.msk [vmem:[%s4 + $0xc0] sm:$0xff] %vm276, %v236
  %302 = vst.msk [vmem:[%s4 + $0xc8] sm:$0xff] %vm276, %v237
  %303 = vst.msk [vmem:[%s4 + $0xd0] sm:$0xff] %vm276, %v238
  %304 = vst.msk [vmem:[%s4 + $0xd8] sm:$0xff] %vm276, %v239
  %305 = vst.msk [vmem:[%s4 + $0xe0] sm:$0xff] %vm276, %v240
  %306 = vst.msk [vmem:[%s4 + $0xe8] sm:$0xff] %vm276, %v241
  %307 = vst.msk [vmem:[%s4 + $0xf0] sm:$0xff] %vm276, %v242
  %308 = vst.msk [vmem:[%s4 + $0xf8] sm:$0xff] %vm276, %v243
  %309 = vst.msk [vmem:[%s4 + $0x100] sm:$0xff] %vm276, %v244
  %310 = vst.msk [vmem:[%s4 + $0x108] sm:$0xff] %vm276, %v245
  %311 = vst.msk [vmem:[%s4 + $0x110] sm:$0xff] %vm276, %v246
  %312 = vst.msk [vmem:[%s4 + $0x118] sm:$0xff] %vm276, %v247
  %313 = vst.msk [vmem:[%s4 + $0x120] sm:$0xff] %vm276, %v248
  %314 = vst.msk [vmem:[%s4 + $0x128] sm:$0xff] %vm276, %v249
  %315 = vst.msk [vmem:[%s4 + $0x130] sm:$0xff] %vm276, %v250
  %316 = vst.msk [vmem:[%s4 + $0x138] sm:$0xff] %vm276, %v251
  %317 = vst.msk [vmem:[%s4 + $0x140] sm:$0xff] %vm276, %v252
  %318 = vst.msk [vmem:[%s4 + $0x148] sm:$0xff] %vm276, %v253
  %319 = vst.msk [vmem:[%s4 + $0x150] sm:$0xff] %vm276, %v254
  %320 = vst.msk [vmem:[%s4 + $0x158] sm:$0xff] %vm276, %v255
  %321 = vst.msk [vmem:[%s4 + $0x160] sm:$0xff] %vm276, %v256
  %322 = vst.msk [vmem:[%s4 + $0x168] sm:$0xff] %vm276, %v257
  %323 = vst.msk [vmem:[%s4 + $0x170] sm:$0xff] %vm276, %v258
  %324 = vst.msk [vmem:[%s4 + $0x178] sm:$0xff] %vm276, %v259
  %325 = vst.msk [vmem:[%s4 + $0x180] sm:$0xff] %vm276, %v260
  %326 = vst.msk [vmem:[%s4 + $0x188] sm:$0xff] %vm276, %v261
  %327 = vst.msk [vmem:[%s4 + $0x190] sm:$0xff] %vm276, %v262
  %328 = vst.msk [vmem:[%s4 + $0x198] sm:$0xff] %vm276, %v263
  %329 = vst.msk [vmem:[%s4 + $0x1a0] sm:$0xff] %vm276, %v264
  %330 = vst.msk [vmem:[%s4 + $0x1a8] sm:$0xff] %vm276, %v265
  %331 = vst.msk [vmem:[%s4 + $0x1b0] sm:$0xff] %vm276, %v266
  %332 = vst.msk [vmem:[%s4 + $0x1b8] sm:$0xff] %vm276, %v267
  %333 = vst.msk [vmem:[%s4 + $0x1c0] sm:$0xff] %vm276, %v268
  %334 = vst.msk [vmem:[%s4 + $0x1c8] sm:$0xff] %vm276, %v269
  %335 = vst.msk [vmem:[%s4 + $0x1d0] sm:$0xff] %vm276, %v270
  %336 = vst.msk [vmem:[%s4 + $0x1d8] sm:$0xff] %vm276, %v271
  %337 = vst.msk [vmem:[%s4 + $0x1e0] sm:$0xff] %vm276, %v272
  %338 = vst.msk [vmem:[%s4 + $0x1e8] sm:$0xff] %vm276, %v273
  %339 = vst.msk [vmem:[%s4 + $0x1f0] sm:$0xff] %vm276, %v274
  %340 = vst.msk [vmem:[%s4 + $0x1f8] sm:$0xff] %vm276, %v275
  %v341 = vld [vmem:[%s2] sm:$0xff]
  %v342 = vld [vmem:[%s2 + $0x8] sm:$0xff]
  %v343 = vld [vmem:[%s2 + $0x10] sm:$0xff]
  %v344 = vld [vmem:[%s2 + $0x18] sm:$0xff]
  %v345 = vld [vmem:[%s2 + $0x20] sm:$0xff]
  %v346 = vld [vmem:[%s2 + $0x28] sm:$0xff]
  %v347 = vld [vmem:[%s2 + $0x30] sm:$0xff]
  %v348 = vld [vmem:[%s2 + $0x38] sm:$0xff]
  %v349 = vld [vmem:[%s2 + $0x40] sm:$0xff]
  %v350 = vld [vmem:[%s2 + $0x48] sm:$0xff]
  %v351 = vld [vmem:[%s2 + $0x50] sm:$0xff]
  %v352 = vld [vmem:[%s2 + $0x58] sm:$0xff]
  %v353 = vld [vmem:[%s2 + $0x60] sm:$0xff]
  %v354 = vld [vmem:[%s2 + $0x68] sm:$0xff]
  %v355 = vld [vmem:[%s2 + $0x70] sm:$0xff]
  %v356 = vld [vmem:[%s2 + $0x78] sm:$0xff]
  %v357 = vld [vmem:[%s2 + $0x80] sm:$0xff]
  %v358 = vld [vmem:[%s2 + $0x88] sm:$0xff]
  %v359 = vld [vmem:[%s2 + $0x90] sm:$0xff]
  %v360 = vld [vmem:[%s2 + $0x98] sm:$0xff]
  %v361 = vld [vmem:[%s2 + $0xa0] sm:$0xff]
  %v362 = vld [vmem:[%s2 + $0xa8] sm:$0xff]
  %v363 = vld [vmem:[%s2 + $0xb0] sm:$0xff]
  %v364 = vld [vmem:[%s2 + $0xb8] sm:$0xff]
  %v365 = vld [vmem:[%s2 + $0xc0] sm:$0xff]
  %v366 = vld [vmem:[%s2 + $0xc8] sm:$0xff]
  %v367 = vld [vmem:[%s2 + $0xd0] sm:$0xff]
  %v368 = vld [vmem:[%s2 + $0xd8] sm:$0xff]
  %v369 = vld [vmem:[%s2 + $0xe0] sm:$0xff]
  %v370 = vld [vmem:[%s2 + $0xe8] sm:$0xff]
  %v371 = vld [vmem:[%s2 + $0xf0] sm:$0xff]
  %v372 = vld [vmem:[%s2 + $0xf8] sm:$0xff]
  %v373 = vld [vmem:[%s2 + $0x100] sm:$0xff]
  %v374 = vld [vmem:[%s2 + $0x108] sm:$0xff]
  %v375 = vld [vmem:[%s2 + $0x110] sm:$0xff]
  %v376 = vld [vmem:[%s2 + $0x118] sm:$0xff]
  %v377 = vld [vmem:[%s2 + $0x120] sm:$0xff]
  %v378 = vld [vmem:[%s2 + $0x128] sm:$0xff]
  %v379 = vld [vmem:[%s2 + $0x130] sm:$0xff]
  %v380 = vld [vmem:[%s2 + $0x138] sm:$0xff]
  %v381 = vld [vmem:[%s2 + $0x140] sm:$0xff]
  %v382 = vld [vmem:[%s2 + $0x148] sm:$0xff]
  %v383 = vld [vmem:[%s2 + $0x150] sm:$0xff]
  %v384 = vld [vmem:[%s2 + $0x158] sm:$0xff]
  %v385 = vld [vmem:[%s2 + $0x160] sm:$0xff]
  %v386 = vld [vmem:[%s2 + $0x168] sm:$0xff]
  %v387 = vld [vmem:[%s2 + $0x170] sm:$0xff]
  %v388 = vld [vmem:[%s2 + $0x178] sm:$0xff]
  %v389 = vld [vmem:[%s2 + $0x180] sm:$0xff]
  %v390 = vld [vmem:[%s2 + $0x188] sm:$0xff]
  %v391 = vld [vmem:[%s2 + $0x190] sm:$0xff]
  %v392 = vld [vmem:[%s2 + $0x198] sm:$0xff]
  %v393 = vld [vmem:[%s2 + $0x1a0] sm:$0xff]
  %v394 = vld [vmem:[%s2 + $0x1a8] sm:$0xff]
  %v395 = vld [vmem:[%s2 + $0x1b0] sm:$0xff]
  %v396 = vld [vmem:[%s2 + $0x1b8] sm:$0xff]
  %v397 = vld [vmem:[%s2 + $0x1c0] sm:$0xff]
  %v398 = vld [vmem:[%s2 + $0x1c8] sm:$0xff]
  %v399 = vld [vmem:[%s2 + $0x1d0] sm:$0xff]
  %v400 = vld [vmem:[%s2 + $0x1d8] sm:$0xff]
  %v401 = vld [vmem:[%s2 + $0x1e0] sm:$0xff]
  %v402 = vld [vmem:[%s2 + $0x1e8] sm:$0xff]
  %v403 = vld [vmem:[%s2 + $0x1f0] sm:$0xff]
  %v404 = vld [vmem:[%s2 + $0x1f8] sm:$0xff]
  %v405 = vld [vmem:[%s3] sm:$0xff]
  %v406 = vld [vmem:[%s3 + $0x8] sm:$0xff]
  %v407 = vld [vmem:[%s3 + $0x10] sm:$0xff]
  %v408 = vld [vmem:[%s3 + $0x18] sm:$0xff]
  %v409 = vld [vmem:[%s3 + $0x20] sm:$0xff]
  %v410 = vld [vmem:[%s3 + $0x28] sm:$0xff]
  %v411 = vld [vmem:[%s3 + $0x30] sm:$0xff]
  %v412 = vld [vmem:[%s3 + $0x38] sm:$0xff]
  %v413 = vld [vmem:[%s3 + $0x40] sm:$0xff]
  %v414 = vld [vmem:[%s3 + $0x48] sm:$0xff]
  %v415 = vld [vmem:[%s3 + $0x50] sm:$0xff]
  %v416 = vld [vmem:[%s3 + $0x58] sm:$0xff]
  %v417 = vld [vmem:[%s3 + $0x60] sm:$0xff]
  %v418 = vld [vmem:[%s3 + $0x68] sm:$0xff]
  %v419 = vld [vmem:[%s3 + $0x70] sm:$0xff]
  %v420 = vld [vmem:[%s3 + $0x78] sm:$0xff]
  %v421 = vld [vmem:[%s3 + $0x80] sm:$0xff]
  %v422 = vld [vmem:[%s3 + $0x88] sm:$0xff]
  %v423 = vld [vmem:[%s3 + $0x90] sm:$0xff]
  %v424 = vld [vmem:[%s3 + $0x98] sm:$0xff]
  %v425 = vld [vmem:[%s3 + $0xa0] sm:$0xff]
  %v426 = vld [vmem:[%s3 + $0xa8] sm:$0xff]
  %v427 = vld [vmem:[%s3 + $0xb0] sm:$0xff]
  %v428 = vld [vmem:[%s3 + $0xb8] sm:$0xff]
  %v429 = vld [vmem:[%s3 + $0xc0] sm:$0xff]
  %v430 = vld [vmem:[%s3 + $0xc8] sm:$0xff]
  %v431 = vld [vmem:[%s3 + $0xd0] sm:$0xff]
  %v432 = vld [vmem:[%s3 + $0xd8] sm:$0xff]
  %v433 = vld [vmem:[%s3 + $0xe0] sm:$0xff]
  %v434 = vld [vmem:[%s3 + $0xe8] sm:$0xff]
  %v435 = vld [vmem:[%s3 + $0xf0] sm:$0xff]
  %v436 = vld [vmem:[%s3 + $0xf8] sm:$0xff]
  %v437 = vld [vmem:[%s3 + $0x100] sm:$0xff]
  %v438 = vld [vmem:[%s3 + $0x108] sm:$0xff]
  %v439 = vld [vmem:[%s3 + $0x110] sm:$0xff]
  %v440 = vld [vmem:[%s3 + $0x118] sm:$0xff]
  %v441 = vld [vmem:[%s3 + $0x120] sm:$0xff]
  %v442 = vld [vmem:[%s3 + $0x128] sm:$0xff]
  %v443 = vld [vmem:[%s3 + $0x130] sm:$0xff]
  %v444 = vld [vmem:[%s3 + $0x138] sm:$0xff]
  %v445 = vld [vmem:[%s3 + $0x140] sm:$0xff]
  %v446 = vld [vmem:[%s3 + $0x148] sm:$0xff]
  %v447 = vld [vmem:[%s3 + $0x150] sm:$0xff]
  %v448 = vld [vmem:[%s3 + $0x158] sm:$0xff]
  %v449 = vld [vmem:[%s3 + $0x160] sm:$0xff]
  %v450 = vld [vmem:[%s3 + $0x168] sm:$0xff]
  %v451 = vld [vmem:[%s3 + $0x170] sm:$0xff]
  %v452 = vld [vmem:[%s3 + $0x178] sm:$0xff]
  %v453 = vld [vmem:[%s3 + $0x180] sm:$0xff]
  %v454 = vld [vmem:[%s3 + $0x188] sm:$0xff]
  %v455 = vld [vmem:[%s3 + $0x190] sm:$0xff]
  %v456 = vld [vmem:[%s3 + $0x198] sm:$0xff]
  %v457 = vld [vmem:[%s3 + $0x1a0] sm:$0xff]
  %v458 = vld [vmem:[%s3 + $0x1a8] sm:$0xff]
  %v459 = vld [vmem:[%s3 + $0x1b0] sm:$0xff]
  %v460 = vld [vmem:[%s3 + $0x1b8] sm:$0xff]
  %v461 = vld [vmem:[%s3 + $0x1c0] sm:$0xff]
  %v462 = vld [vmem:[%s3 + $0x1c8] sm:$0xff]
  %v463 = vld [vmem:[%s3 + $0x1d0] sm:$0xff]
  %v464 = vld [vmem:[%s3 + $0x1d8] sm:$0xff]
  %v465 = vld [vmem:[%s3 + $0x1e0] sm:$0xff]
  %v466 = vld [vmem:[%s3 + $0x1e8] sm:$0xff]
  %v467 = vld [vmem:[%s3 + $0x1f0] sm:$0xff]
  %v468 = vld [vmem:[%s3 + $0x1f8] sm:$0xff]
  %vm469 = vcmask 195584
  %v470 = vsel %vm469, %v405, 0.0
  %v471 = vsel %vm469, %v406, 0.0
  %v472 = vsel %vm469, %v407, 0.0
  %v473 = vsel %vm469, %v408, 0.0
  %v474 = vsel %vm469, %v409, 0.0
  %v475 = vsel %vm469, %v410, 0.0
  %v476 = vsel %vm469, %v411, 0.0
  %v477 = vsel %vm469, %v412, 0.0
  %v478 = vsel %vm469, %v413, 0.0
  %v479 = vsel %vm469, %v414, 0.0
  %v480 = vsel %vm469, %v415, 0.0
  %v481 = vsel %vm469, %v416, 0.0
  %v482 = vsel %vm469, %v417, 0.0
  %v483 = vsel %vm469, %v418, 0.0
  %v484 = vsel %vm469, %v419, 0.0
  %v485 = vsel %vm469, %v420, 0.0
  %v486 = vsel %vm469, %v421, 0.0
  %v487 = vsel %vm469, %v422, 0.0
  %v488 = vsel %vm469, %v423, 0.0
  %v489 = vsel %vm469, %v424, 0.0
  %v490 = vsel %vm469, %v425, 0.0
  %v491 = vsel %vm469, %v426, 0.0
  %v492 = vsel %vm469, %v427, 0.0
  %v493 = vsel %vm469, %v428, 0.0
  %v494 = vsel %vm469, %v429, 0.0
  %v495 = vsel %vm469, %v430, 0.0
  %v496 = vsel %vm469, %v431, 0.0
  %v497 = vsel %vm469, %v432, 0.0
  %v498 = vsel %vm469, %v433, 0.0
  %v499 = vsel %vm469, %v434, 0.0
  %v500 = vsel %vm469, %v435, 0.0
  %v501 = vsel %vm469, %v436, 0.0
  %v502 = vsel %vm469, %v437, 0.0
  %v503 = vsel %vm469, %v438, 0.0
  %v504 = vsel %vm469, %v439, 0.0
  %v505 = vsel %vm469, %v440, 0.0
  %v506 = vsel %vm469, %v441, 0.0
  %v507 = vsel %vm469, %v442, 0.0
  %v508 = vsel %vm469, %v443, 0.0
  %v509 = vsel %vm469, %v444, 0.0
  %v510 = vsel %vm469, %v445, 0.0
  %v511 = vsel %vm469, %v446, 0.0
  %v512 = vsel %vm469, %v447, 0.0
  %v513 = vsel %vm469, %v448, 0.0
  %v514 = vsel %vm469, %v449, 0.0
  %v515 = vsel %vm469, %v450, 0.0
  %v516 = vsel %vm469, %v451, 0.0
  %v517 = vsel %vm469, %v452, 0.0
  %v518 = vsel %vm469, %v453, 0.0
  %v519 = vsel %vm469, %v454, 0.0
  %v520 = vsel %vm469, %v455, 0.0
  %v521 = vsel %vm469, %v456, 0.0
  %v522 = vsel %vm469, %v457, 0.0
  %v523 = vsel %vm469, %v458, 0.0
  %v524 = vsel %vm469, %v459, 0.0
  %v525 = vsel %vm469, %v460, 0.0
  %v526 = vsel %vm469, %v461, 0.0
  %v527 = vsel %vm469, %v462, 0.0
  %v528 = vsel %vm469, %v463, 0.0
  %v529 = vsel %vm469, %v464, 0.0
  %v530 = vsel %vm469, %v465, 0.0
  %v531 = vsel %vm469, %v466, 0.0
  %v532 = vsel %vm469, %v467, 0.0
  %v533 = vsel %vm469, %v468, 0.0
  %v534 = vadd.f32 %v341, %v470
  %v535 = vadd.f32 %v342, %v471
  %v536 = vadd.f32 %v343, %v472
  %v537 = vadd.f32 %v344, %v473
  %v538 = vadd.f32 %v345, %v474
  %v539 = vadd.f32 %v346, %v475
  %v540 = vadd.f32 %v347, %v476
  %v541 = vadd.f32 %v348, %v477
  %v542 = vadd.f32 %v349, %v478
  %v543 = vadd.f32 %v350, %v479
  %v544 = vadd.f32 %v351, %v480
  %v545 = vadd.f32 %v352, %v481
  %v546 = vadd.f32 %v353, %v482
  %v547 = vadd.f32 %v354, %v483
  %v548 = vadd.f32 %v355, %v484
  %v549 = vadd.f32 %v356, %v485
  %v550 = vadd.f32 %v357, %v486
  %v551 = vadd.f32 %v358, %v487
  %v552 = vadd.f32 %v359, %v488
  %v553 = vadd.f32 %v360, %v489
  %v554 = vadd.f32 %v361, %v490
  %v555 = vadd.f32 %v362, %v491
  %v556 = vadd.f32 %v363, %v492
  %v557 = vadd.f32 %v364, %v493
  %v558 = vadd.f32 %v365, %v494
  %v559 = vadd.f32 %v366, %v495
  %v560 = vadd.f32 %v367, %v496
  %v561 = vadd.f32 %v368, %v497
  %v562 = vadd.f32 %v369, %v498
  %v563 = vadd.f32 %v370, %v499
  %v564 = vadd.f32 %v371, %v500
  %v565 = vadd.f32 %v372, %v501
  %v566 = vadd.f32 %v373, %v502
  %v567 = vadd.f32 %v374, %v503
  %v568 = vadd.f32 %v375, %v504
  %v569 = vadd.f32 %v376, %v505
  %v570 = vadd.f32 %v377, %v506
  %v571 = vadd.f32 %v378, %v507
  %v572 = vadd.f32 %v379, %v508
  %v573 = vadd.f32 %v380, %v509
  %v574 = vadd.f32 %v381, %v510
  %v575 = vadd.f32 %v382, %v511
  %v576 = vadd.f32 %v383, %v512
  %v577 = vadd.f32 %v384, %v513
  %v578 = vadd.f32 %v385, %v514
  %v579 = vadd.f32 %v386, %v515
  %v580 = vadd.f32 %v387, %v516
  %v581 = vadd.f32 %v388, %v517
  %v582 = vadd.f32 %v389, %v518
  %v583 = vadd.f32 %v390, %v519
  %v584 = vadd.f32 %v391, %v520
  %v585 = vadd.f32 %v392, %v521
  %v586 = vadd.f32 %v393, %v522
  %v587 = vadd.f32 %v394, %v523
  %v588 = vadd.f32 %v395, %v524
  %v589 = vadd.f32 %v396, %v525
  %v590 = vadd.f32 %v397, %v526
  %v591 = vadd.f32 %v398, %v527
  %v592 = vadd.f32 %v399, %v528
  %v593 = vadd.f32 %v400, %v529
  %v594 = vadd.f32 %v401, %v530
  %v595 = vadd.f32 %v402, %v531
  %v596 = vadd.f32 %v403, %v532
  %v597 = vadd.f32 %v404, %v533
  %vm598 = vcmask 392192
  %599 = vst.msk [vmem:[%s5] sm:$0xff] %vm598, %v534
  %600 = vst.msk [vmem:[%s5 + $0x8] sm:$0xff] %vm598, %v535
  %601 = vst.msk [vmem:[%s5 + $0x10] sm:$0xff] %vm598, %v536
  %602 = vst.msk [vmem:[%s5 + $0x18] sm:$0xff] %vm598, %v537
  %603 = vst.msk [vmem:[%s5 + $0x20] sm:$0xff] %vm598, %v538
  %604 = vst.msk [vmem:[%s5 + $0x28] sm:$0xff] %vm598, %v539
  %605 = vst.msk [vmem:[%s5 + $0x30] sm:$0xff] %vm598, %v540
  %606 = vst.msk [vmem:[%s5 + $0x38] sm:$0xff] %vm598, %v541
  %607 = vst.msk [vmem:[%s5 + $0x40] sm:$0xff] %vm598, %v542
  %608 = vst.msk [vmem:[%s5 + $0x48] sm:$0xff] %vm598, %v543
  %609 = vst.msk [vmem:[%s5 + $0x50] sm:$0xff] %vm598, %v544
  %610 = vst.msk [vmem:[%s5 + $0x58] sm:$0xff] %vm598, %v545
  %611 = vst.msk [vmem:[%s5 + $0x60] sm:$0xff] %vm598, %v546
  %612 = vst.msk [vmem:[%s5 + $0x68] sm:$0xff] %vm598, %v547
  %613 = vst.msk [vmem:[%s5 + $0x70] sm:$0xff] %vm598, %v548
  %614 = vst.msk [vmem:[%s5 + $0x78] sm:$0xff] %vm598, %v549
  %615 = vst.msk [vmem:[%s5 + $0x80] sm:$0xff] %vm598, %v550
  %616 = vst.msk [vmem:[%s5 + $0x88] sm:$0xff] %vm598, %v551
  %617 = vst.msk [vmem:[%s5 + $0x90] sm:$0xff] %vm598, %v552
  %618 = vst.msk [vmem:[%s5 + $0x98] sm:$0xff] %vm598, %v553
  %619 = vst.msk [vmem:[%s5 + $0xa0] sm:$0xff] %vm598, %v554
  %620 = vst.msk [vmem:[%s5 + $0xa8] sm:$0xff] %vm598, %v555
  %621 = vst.msk [vmem:[%s5 + $0xb0] sm:$0xff] %vm598, %v556
  %622 = vst.msk [vmem:[%s5 + $0xb8] sm:$0xff] %vm598, %v557
  %623 = vst.msk [vmem:[%s5 + $0xc0] sm:$0xff] %vm598, %v558
  %624 = vst.msk [vmem:[%s5 + $0xc8] sm:$0xff] %vm598, %v559
  %625 = vst.msk [vmem:[%s5 + $0xd0] sm:$0xff] %vm598, %v560
  %626 = vst.msk [vmem:[%s5 + $0xd8] sm:$0xff] %vm598, %v561
  %627 = vst.msk [vmem:[%s5 + $0xe0] sm:$0xff] %vm598, %v562
  %628 = vst.msk [vmem:[%s5 + $0xe8] sm:$0xff] %vm598, %v563
  %629 = vst.msk [vmem:[%s5 + $0xf0] sm:$0xff] %vm598, %v564
  %630 = vst.msk [vmem:[%s5 + $0xf8] sm:$0xff] %vm598, %v565
  %631 = vst.msk [vmem:[%s5 + $0x100] sm:$0xff] %vm598, %v566
  %632 = vst.msk [vmem:[%s5 + $0x108] sm:$0xff] %vm598, %v567
  %633 = vst.msk [vmem:[%s5 + $0x110] sm:$0xff] %vm598, %v568
  %634 = vst.msk [vmem:[%s5 + $0x118] sm:$0xff] %vm598, %v569
  %635 = vst.msk [vmem:[%s5 + $0x120] sm:$0xff] %vm598, %v570
  %636 = vst.msk [vmem:[%s5 + $0x128] sm:$0xff] %vm598, %v571
  %637 = vst.msk [vmem:[%s5 + $0x130] sm:$0xff] %vm598, %v572
  %638 = vst.msk [vmem:[%s5 + $0x138] sm:$0xff] %vm598, %v573
  %639 = vst.msk [vmem:[%s5 + $0x140] sm:$0xff] %vm598, %v574
  %640 = vst.msk [vmem:[%s5 + $0x148] sm:$0xff] %vm598, %v575
  %641 = vst.msk [vmem:[%s5 + $0x150] sm:$0xff] %vm598, %v576
  %642 = vst.msk [vmem:[%s5 + $0x158] sm:$0xff] %vm598, %v577
  %643 = vst.msk [vmem:[%s5 + $0x160] sm:$0xff] %vm598, %v578
  %644 = vst.msk [vmem:[%s5 + $0x168] sm:$0xff] %vm598, %v579
  %645 = vst.msk [vmem:[%s5 + $0x170] sm:$0xff] %vm598, %v580
  %646 = vst.msk [vmem:[%s5 + $0x178] sm:$0xff] %vm598, %v581
  %647 = vst.msk [vmem:[%s5 + $0x180] sm:$0xff] %vm598, %v582
  %648 = vst.msk [vmem:[%s5 + $0x188] sm:$0xff] %vm598, %v583
  %649 = vst.msk [vmem:[%s5 + $0x190] sm:$0xff] %vm598, %v584
  %650 = vst.msk [vmem:[%s5 + $0x198] sm:$0xff] %vm598, %v585
  %651 = vst.msk [vmem:[%s5 + $0x1a0] sm:$0xff] %vm598, %v586
  %652 = vst.msk [vmem:[%s5 + $0x1a8] sm:$0xff] %vm598, %v587
  %653 = vst.msk [vmem:[%s5 + $0x1b0] sm:$0xff] %vm598, %v588
  %654 = vst.msk [vmem:[%s5 + $0x1b8] sm:$0xff] %vm598, %v589
  %655 = vst.msk [vmem:[%s5 + $0x1c0] sm:$0xff] %vm598, %v590
  %656 = vst.msk [vmem:[%s5 + $0x1c8] sm:$0xff] %vm598, %v591
  %657 = vst.msk [vmem:[%s5 + $0x1d0] sm:$0xff] %vm598, %v592
  %658 = vst.msk [vmem:[%s5 + $0x1d8] sm:$0xff] %vm598, %v593
  %659 = vst.msk [vmem:[%s5 + $0x1e0] sm:$0xff] %vm598, %v594
  %660 = vst.msk [vmem:[%s5 + $0x1e8] sm:$0xff] %vm598, %v595
  %661 = vst.msk [vmem:[%s5 + $0x1f0] sm:$0xff] %vm598, %v596
  %662 = vst.msk [vmem:[%s5 + $0x1f8] sm:$0xff] %vm598, %v597
  // Predicated region
  $region18: #{tpu_custom_call.1} parent=0 // pred_check
    _
  $region19: #{tpu_custom_call.1} parent=0 // pred_check_branch
    %664 = sbr.rel (0) target = $region21
  $region20: #{tpu_custom_call.1} parent=0 // pred_region
    _
  $region21: #{tpu_custom_call.1} parent=0 // pred_fallthru
    _
  // Predicated region
  $region22: #{tpu_custom_call.1} parent=0 // pred_check
    _
  $region23: #{tpu_custom_call.1} parent=0 // pred_check_branch
    %666 = sbr.rel (0) target = $region25
  $region24: #{tpu_custom_call.1} parent=0 // pred_region
    _
  $region25: #{tpu_custom_call.1} parent=0 // pred_fallthru
    _
  // Predicated region
  $region26: #{tpu_custom_call.1} parent=0 // pred_check
    _
  $region27: #{tpu_custom_call.1} parent=0 // pred_check_branch
    %668 = sbr.rel (0) target = $region29
  $region28: #{tpu_custom_call.1} parent=0 // pred_region
    _
  $region29: #{tpu_custom_call.1} parent=0 // pred_fallthru
    _
  // Predicated region
  $region30: #{tpu_custom_call.1} parent=0 // pred_check
    _
  $region31: #{tpu_custom_call.1} parent=0 // pred_check_branch
    %670 = sbr.rel (0) target = $region33
  $region32: #{tpu_custom_call.1} parent=0 // pred_region
    _
  $region33: #{tpu_custom_call.1} parent=0 // pred_fallthru
    _

</llo_original>
